<compile_context>
chip_gen: v5e
topology: v5e:2x2
jax: 0.10.0
libtpu: 0.0.40
codegen_flags: <defaults>
</compile_context>

<pallas_src>
import math
import functools

import jax
import jax.numpy as jnp
from jax import lax
from jax.experimental import pallas as pl
from jax.experimental.pallas import tpu as pltpu


# --------------------------------------------------------------------------- #
# Stage 1: collect attention (online softmax over sequence tiles)             #
# --------------------------------------------------------------------------- #
def _collect_kernel(x_ref, cq_ref, wkvc_ref, bkvc_ref, wkvd_ref, bkvd_ref,
                    dk_ref, dv_ref, m_s, l_s, acc_s):
    """Grid (B, N//tN); axis 1 is the reduction ("arbitrary").

    Outputs dk/dv (distribute K/V of proxy_updated) stay resident across axis 1
    and are written once, in the finalize step of the last tile.
    """
    k = pl.program_id(1)
    D = acc_s.shape[-1]

    @pl.when(k == 0)
    def _init():
        m_s[...] = jnp.full_like(m_s, -jnp.inf)
        l_s[...] = jnp.zeros_like(l_s)
        acc_s[...] = jnp.zeros_like(acc_s)

    # Fused collect_{k,v} projection: one [tN, D] x [D, 2D] GEMM (x already bf16).
    xb = x_ref[0]                                                        # [tN, D]
    kv = jnp.dot(xb, wkvc_ref[...],
                 preferred_element_type=jnp.float32) + bkvc_ref[...]     # [tN, 2D]
    ck = kv[:, :D].astype(xb.dtype)
    cv = kv[:, D:].astype(xb.dtype)

    # Scores [P, tN]: contract last dims of both operands (no explicit ck.T).
    # cq_ref holds the precomputed, 1/sqrt(D)-scaled collect_q of the proxies.
    s = lax.dot_general(cq_ref[...], ck, (((1,), (1,)), ((), ())),
                        preferred_element_type=jnp.float32)

    m_new = jnp.maximum(m_s[...], jnp.max(s, axis=-1, keepdims=True))
    alpha = jnp.exp(m_s[...] - m_new)
    p = jnp.exp(s - m_new)
    l_s[...] = alpha * l_s[...] + jnp.sum(p, axis=-1, keepdims=True)
    acc_s[...] = alpha * acc_s[...] + jnp.dot(
        p.astype(cv.dtype), cv, preferred_element_type=jnp.float32)
    m_s[...] = m_new

    @pl.when(k == pl.num_programs(1) - 1)
    def _finalize():
        # Exact division (once per batch element; review correctness concern).
        pu = (acc_s[...] / l_s[...]).astype(wkvd_ref.dtype)              # [P, D]
        # Fused distribute_{k,v} projection, computed exactly once per batch.
        dkv = jnp.dot(pu, wkvd_ref[...],
                      preferred_element_type=jnp.float32) + bkvd_ref[...]
        dk_ref[0] = dkv[:, :D].astype(dk_ref.dtype)
        dv_ref[0] = dkv[:, D:].astype(dv_ref.dtype)


# --------------------------------------------------------------------------- #
# Stage 2: distribute attention + out_proj + residual + LayerNorm             #
# --------------------------------------------------------------------------- #
def _distribute_kernel(x_ref, dk_ref, dv_ref, wq_ref, bq_ref,
                       wo_ref, bo_ref, ln_ref, out_ref, *, eps):
    md = wq_ref.dtype
    x = x_ref[0]                                                         # f32 residual
    xb = x.astype(md)
    dk = dk_ref[0]                                                       # [P, D] bf16
    dv = dv_ref[0]                                                       # [P, D] bf16

    # distribute_q (1/sqrt(D) folded into wq/bq on the host).
    dq = jnp.dot(xb, wq_ref[...],
                 preferred_element_type=jnp.float32) + bq_ref[...]       # [tN, D]

    # Scores [tN, P]: contract last dims (no explicit dk.T).
    s = lax.dot_general(dq.astype(md), dk, (((1,), (1,)), ((), ())),
                        preferred_element_type=jnp.float32)
    s = s - jnp.max(s, axis=-1, keepdims=True)
    p = jnp.exp(s)
    attn = p * pl.reciprocal(jnp.sum(p, axis=-1, keepdims=True), approx=True)

    out = jnp.dot(attn.astype(md), dv, preferred_element_type=jnp.float32)
    out = jnp.dot(out.astype(md), wo_ref[...],
                  preferred_element_type=jnp.float32) + bo_ref[...]

    # Residual + LayerNorm (f32, two-pass variance for numerical robustness).
    h = x + out
    mu = jnp.mean(h, axis=-1, keepdims=True)
    c = h - mu
    var = jnp.mean(c * c, axis=-1, keepdims=True)
    hn = c * lax.rsqrt(var + eps)
    y = hn * ln_ref[0:1, :] + ln_ref[1:2, :]
    out_ref[0] = y.astype(out_ref.dtype)


# --------------------------------------------------------------------------- #
# Host-side helpers                                                            #
# --------------------------------------------------------------------------- #
def _spec(shape, index_map, buffers, use_hints):
    """BlockSpec with an optional buffer-count hint; degrades to a plain spec."""
    if use_hints and buffers is not None and hasattr(pl, "Buffered"):
        try:
            return pl.BlockSpec(shape, index_map, pipeline_mode=pl.Buffered(buffers))
        except TypeError:
            pass
    return pl.BlockSpec(shape, index_map)


def _tpu_vmem_bytes():
    try:
        return int(pltpu.get_tpu_info().vmem_capacity_bytes)
    except Exception:
        return 64 * 1024 * 1024          # conservative: v7x per-TensorCore VMEM


def _pick_tile(n, cap):
    """Largest 16- (then 8-) aligned divisor of n that is <= cap."""
    cap = max(1, min(cap, n))
    for align in (16, 8):
        c = (cap // align) * align
        while c >= align:
            if n % c == 0:
                return c
            c -= align
    # No aligned divisor under the cap (pathological N): fall back to the whole
    # sequence.  Pad N at the model level to avoid this at production sizes.
    return n


def pack_params(params, matmul_dtype=jnp.bfloat16):
    """One-time weight packing (call at parameter load, NOT per forward pass)."""
    md = matmul_dtype
    f32 = jnp.float32
    D = params["wqc"].shape[0]
    scale = math.sqrt(D)
    # collect_q of the (input-independent) proxy points, 1/sqrt(D) folded in.
    cq = (params["proxy"] @ params["wqc"] + params["bqc"]) / scale
    return {
        "matmul_dtype": md,
        "cq": cq.astype(md),                                              # [P, D]
        "wkv_c": jnp.concatenate([params["wkc"], params["wvc"]], 1).astype(md),
        "bkv_c": jnp.concatenate([params["bkc"], params["bvc"]], 1).astype(f32),
        "wkv_d": jnp.concatenate([params["wkd"], params["wvd"]], 1).astype(md),
        "bkv_d": jnp.concatenate([params["bkd"], params["bvd"]], 1).astype(f32),
        "wq_d": (params["wqd"] / scale).astype(md),
        "bq_d": (params["bqd"] / scale).astype(f32),
        "wo": params["wo"].astype(md),
        "bo": params["bo"].astype(f32),
        "ln": jnp.concatenate([params["gamma"], params["beta"]], 0).astype(f32),
    }


def _forward(x, x_b, pk, B, N, D, P, block_n, n_tiles, vmem_limit, eps, use_hints):
    md = pk["matmul_dtype"]
    wbytes = jnp.dtype(md).itemsize
    const = lambda shape: _spec(shape, lambda b, k: (0, 0), 1, use_hints)

    # ------------- stage 1: collect (+ once-per-batch dk/dv projection) -----
    collect_cost = pl.CostEstimate(
        flops=int(B * (4 * N * D * D + 4 * P * N * D + 4 * P * D * D)),
        transcendentals=int(B * (P * N + P * n_tiles)),
        bytes_accessed=int(B * N * D * wbytes + 2 * B * P * D * wbytes
                           + (4 * D * D + P * D) * wbytes + 6 * D * 4),
    )
    dk, dv = pl.pallas_call(
        _collect_kernel,
        out_shape=(jax.ShapeDtypeStruct((B, P, D), md),
                   jax.ShapeDtypeStruct((B, P, D), md)),
        grid_spec=pltpu.PrefetchScalarGridSpec(
            num_scalar_prefetch=0,
            grid=(B, n_tiles),
            in_specs=[
                _spec((1, block_n, D), lambda b, k: (b, k, 0), 3, use_hints),  # x (bf16)
                const((P, D)),         # precomputed, scaled collect_q(proxy)
                const((D, 2 * D)),     # fused collect_{k,v} weight
                const((1, 2 * D)),     # fused collect_{k,v} bias
                const((D, 2 * D)),     # fused distribute_{k,v} weight
                const((1, 2 * D)),     # fused distribute_{k,v} bias
            ],
            out_specs=[pl.BlockSpec((1, P, D), lambda b, k: (b, 0, 0)),
                       pl.BlockSpec((1, P, D), lambda b, k: (b, 0, 0))],
            scratch_shapes=[
                pltpu.VMEM((P, 1), jnp.float32),   # running max
                pltpu.VMEM((P, 1), jnp.float32),   # running denominator
                pltpu.VMEM((P, D), jnp.float32),   # running numerator
            ],
        ),
        compiler_params=pltpu.CompilerParams(
            dimension_semantics=("parallel", "arbitrary"),
            vmem_limit_bytes=vmem_limit),
        cost_estimate=collect_cost,
    )(x_b, pk["cq"], pk["wkv_c"], pk["bkv_c"], pk["wkv_d"], pk["bkv_d"])

    # ------ stage 2: distribute + out_proj + residual + LayerNorm (parallel) -
    distribute_cost = pl.CostEstimate(
        flops=int(B * (4 * N * D * D + 4 * N * P * D)),
        transcendentals=int(B * N * (P + 2)),
        bytes_accessed=int(2 * B * N * D * 4 + 2 * B * P * D * wbytes
                           + 2 * D * D * wbytes + 10 * D * 4),
    )
    out = pl.pallas_call(
        functools.partial(_distribute_kernel, eps=eps),
        out_shape=jax.ShapeDtypeStruct((B, N, D), x.dtype),
        grid_spec=pltpu.PrefetchScalarGridSpec(
            num_scalar_prefetch=0,
            grid=(B, n_tiles),
            in_specs=[
                pl.BlockSpec((1, block_n, D), lambda b, n: (b, n, 0)),  # x (f32 residual)
                pl.BlockSpec((1, P, D), lambda b, n: (b, 0, 0)),        # dk (bf16)
                pl.BlockSpec((1, P, D), lambda b, n: (b, 0, 0)),        # dv (bf16)
                const((D, D)),         # distribute_q weight (scale folded)
                const((1, D)),         # distribute_q bias
                const((D, D)),         # out_proj weight
                const((1, D)),         # out_proj bias
                const((2, D)),         # layernorm [gamma; beta]
            ],
            out_specs=pl.BlockSpec((1, block_n, D), lambda b, n: (b, n, 0)),
        ),
        compiler_params=pltpu.CompilerParams(
            dimension_semantics=("parallel", "parallel"),
            vmem_limit_bytes=vmem_limit),
        cost_estimate=distribute_cost,
    )(x, dk, dv, pk["wq_d"], pk["bq_d"], pk["wo"], pk["bo"], pk["ln"])
    return out


def global_cross_attention(x, packed, *, block_n=None):
    """x: [B, N, D] float32.  packed: output of pack_params()."""
    B, N, D = x.shape
    P = packed["cq"].shape[0]
    md = packed["matmul_dtype"]
    eps = 1e-5

    vmem_cap = _tpu_vmem_bytes()
    # Never the full physical VMEM: leave headroom for compiler scratch / sems
    # (48 MiB on v7x's 64 MiB per TC, 96 MiB on v5e/v6e's 128 MiB).
    vmem_limit = min((vmem_cap * 3) // 4, 112 * 1024 * 1024)

    if block_n is None:
        cap = 1024 if vmem_cap >= (96 << 20) else 512        # generation cap
        cap = min(cap, max(8, (vmem_limit // 4) // (16 * D)))  # f32 x-tile budget
        block_n = _pick_tile(N, cap)
    elif N % block_n != 0:
        block_n = _pick_tile(N, block_n)
    n_tiles = N // block_n

    # bf16 copy of x for stage 1 (it only touches x through the kv projection);
    # the f32 x is consumed only by stage 2 for the residual.
    x_b = x.astype(md)

    try:
        return _forward(x, x_b, packed, B, N, D, P, block_n, n_tiles,
                        vmem_limit, eps, use_hints=True)
    except Exception:
        # pl.Buffered / pipeline_mode unsupported or rejected on this backend:
        # retry with default (double) buffering; unrelated errors re-raise here.
        return _forward(x, x_b, packed, B, N, D, P, block_n, n_tiles,
                        vmem_limit, eps, use_hints=False)


# --------------------------------------------------------------------------- #
# Synthetic parameters + pure-JAX reference                                    #
# --------------------------------------------------------------------------- #
def init_params(key, d_model, num_proxy_points):
    """Deterministic synthetic parameters (weights stored pre-transposed [in,out])."""
    keys = jax.random.split(key, 16)
    s = 1.0 / math.sqrt(d_model)

    def w(k):
        return jax.random.normal(k, (d_model, d_model), jnp.float32) * s

    def b(k):
        return jax.random.normal(k, (1, d_model), jnp.float32) * s

    return {
        "proxy": jax.random.normal(keys[0], (num_proxy_points, d_model), jnp.float32),
        "wqc": w(keys[1]), "bqc": b(keys[2]),
        "wkc": w(keys[3]), "bkc": b(keys[4]),
        "wvc": w(keys[5]), "bvc": b(keys[6]),
        "wqd": w(keys[7]), "bqd": b(keys[8]),
        "wkd": w(keys[9]), "bkd": b(keys[10]),
        "wvd": w(keys[11]), "bvd": b(keys[12]),
        "wo": w(keys[13]), "bo": b(keys[14]),
        "gamma": jnp.ones((1, d_model), jnp.float32),
        "beta": jnp.zeros((1, d_model), jnp.float32),
    }


def _reference(x, p):
    """Pure-JAX f32 reference replicating the PyTorch forward (eval mode)."""
    D = x.shape[-1]
    scale = math.sqrt(D)
    proxy = jnp.broadcast_to(p["proxy"][None], (x.shape[0],) + p["proxy"].shape)
    cq = proxy @ p["wqc"] + p["bqc"]
    ck = x @ p["wkc"] + p["bkc"]
    cv = x @ p["wvc"] + p["bvc"]
    ca = jax.nn.softmax(cq @ jnp.swapaxes(ck, -2, -1) / scale, axis=-1)
    pu = ca @ cv
    dq = x @ p["wqd"] + p["bqd"]
    dk = pu @ p["wkd"] + p["bkd"]
    dv = pu @ p["wvd"] + p["bvd"]
    da = jax.nn.softmax(dq @ jnp.swapaxes(dk, -2, -1) / scale, axis=-1)
    out = da @ dv
    out = out @ p["wo"] + p["bo"]
    h = x + out
    mu = jnp.mean(h, -1, keepdims=True)
    var = jnp.mean((h - mu) ** 2, -1, keepdims=True)
    return (h - mu) * jax.lax.rsqrt(var + 1e-5) * p["gamma"] + p["beta"]


if __name__ == "__main__":
    B, N, D, P = 2, 32, 32, 8
    key = jax.random.PRNGKey(0)
    kx, kp = jax.random.split(key)
    x = jax.random.normal(kx, (B, N, D), jnp.float32)
    params = init_params(kp, D, P)
    packed = pack_params(params)       # one-time packing, off the forward path

    # block_n=16 -> 2 sequence tiles per batch element, so the online-softmax
    # reduction path of the collect stage (and its finalize) is exercised.
    out = global_cross_attention(x, packed, block_n=16)
    out = jax.block_until_ready(out)

    ref = _reference(x, params)
    assert out.shape == (B, N, D)
    err = float(jnp.max(jnp.abs(out - ref)))
    # Remaining error is bf16 MXU inputs/weights (+ approx reciprocal in the
    # per-tile distribute softmax) vs. a pure-f32 reference.
    assert err < 1e-1, f"max abs err {err}"
    print("KERNEL_OK")
</pallas_src>

<mosaic_0001>
module attributes {stable_mosaic.version = 11 : i64} {
  func.func @_collect_kernel(%arg0: i32, %arg1: i32, %arg2: memref<1x16x32xbf16, #tpu.memory_space<vmem>>, %arg3: memref<8x32xbf16, #tpu.memory_space<vmem>>, %arg4: memref<32x64xbf16, #tpu.memory_space<vmem>>, %arg5: memref<1x64xf32, #tpu.memory_space<vmem>>, %arg6: memref<32x64xbf16, #tpu.memory_space<vmem>>, %arg7: memref<1x64xf32, #tpu.memory_space<vmem>>, %arg8: memref<1x8x32xbf16, #tpu.memory_space<vmem>>, %arg9: memref<1x8x32xbf16, #tpu.memory_space<vmem>>, %arg10: memref<8x1xf32, #tpu.memory_space<vmem>>, %arg11: memref<8x1xf32, #tpu.memory_space<vmem>>, %arg12: memref<8x32xf32, #tpu.memory_space<vmem>>) attributes {dimension_semantics = [#tpu.dimension_semantics<parallel>, #tpu.dimension_semantics<arbitrary>], iteration_bounds = array<i64: 2, 2>, scalar_prefetch = 0 : i64, scratch_operands = 3 : i64, tpu.core_type = #tpu.core_type<tc>, window_params = [{transform_indices = @transform_0, window_bounds = array<i64: 1, 16, 32>}, {pipeline_mode = #tpu.pipeline_mode<synchronous>, transform_indices = @transform_1, window_bounds = array<i64: 8, 32>}, {pipeline_mode = #tpu.pipeline_mode<synchronous>, transform_indices = @transform_2, window_bounds = array<i64: 32, 64>}, {pipeline_mode = #tpu.pipeline_mode<synchronous>, transform_indices = @transform_3, window_bounds = array<i64: 1, 64>}, {pipeline_mode = #tpu.pipeline_mode<synchronous>, transform_indices = @transform_4, window_bounds = array<i64: 32, 64>}, {pipeline_mode = #tpu.pipeline_mode<synchronous>, transform_indices = @transform_5, window_bounds = array<i64: 1, 64>}, {transform_indices = @transform_6, window_bounds = array<i64: 1, 8, 32>}, {transform_indices = @transform_7, window_bounds = array<i64: 1, 8, 32>}]} {
    %c0_i32 = arith.constant 0 : i32
    %0 = arith.cmpi eq, %arg1, %c0_i32 : i32
    %1 = arith.extui %0 : i1 to i32
    %c0_i32_0 = arith.constant 0 : i32
    %2 = arith.cmpi ne, %1, %c0_i32_0 : i32
    scf.if %2 {
      %cst_28 = arith.constant 0xFF800000 : f32
      %43 = vector.broadcast %cst_28 : f32 to vector<8x1xf32>
      %c0_29 = arith.constant 0 : index
      %c0_30 = arith.constant 0 : index
      %44 = vector.load %arg10[%c0_29, %c0_30] : memref<8x1xf32, #tpu.memory_space<vmem>>, vector<8x1xf32>
      tpu.vector_store %arg10[%c0_29, %c0_30], %43 {strides = array<i32>} : memref<8x1xf32, #tpu.memory_space<vmem>>, vector<8x1xf32>,
      %cst_31 = arith.constant 0.000000e+00 : f32
      %45 = vector.broadcast %cst_31 : f32 to vector<8x1xf32>
      %c0_32 = arith.constant 0 : index
      %c0_33 = arith.constant 0 : index
      %46 = vector.load %arg11[%c0_32, %c0_33] : memref<8x1xf32, #tpu.memory_space<vmem>>, vector<8x1xf32>
      tpu.vector_store %arg11[%c0_32, %c0_33], %45 {strides = array<i32>} : memref<8x1xf32, #tpu.memory_space<vmem>>, vector<8x1xf32>,
      %cst_34 = arith.constant 0.000000e+00 : f32
      %47 = vector.broadcast %cst_34 : f32 to vector<8x32xf32>
      %c0_35 = arith.constant 0 : index
      %c0_36 = arith.constant 0 : index
      %48 = vector.load %arg12[%c0_35, %c0_36] : memref<8x32xf32, #tpu.memory_space<vmem>>, vector<8x32xf32>
      tpu.vector_store %arg12[%c0_35, %c0_36], %47 {strides = array<i32>} : memref<8x32xf32, #tpu.memory_space<vmem>>, vector<8x32xf32>,
    } else {
    }
    %c0 = arith.constant 0 : index
    %c0_1 = arith.constant 0 : index
    %c0_2 = arith.constant 0 : index
    %3 = vector.load %arg2[%c0, %c0_1, %c0_2] : memref<1x16x32xbf16, #tpu.memory_space<vmem>>, vector<1x16x32xbf16>
    %4 = vector.shape_cast %3 : vector<1x16x32xbf16> to vector<16x32xbf16>
    %c0_3 = arith.constant 0 : index
    %c0_4 = arith.constant 0 : index
    %5 = vector.load %arg4[%c0_3, %c0_4] : memref<32x64xbf16, #tpu.memory_space<vmem>>, vector<32x64xbf16>
    %cst = arith.constant dense<0.000000e+00> : vector<16x64xf32>
    %6 = tpu.matmul %4, %5, %cst {dimension_numbers = #tpu.dot_dimension_numbers<[1], [0], [0], [1], [0, 0, 1, 1], [], []>} : vector<16x32xbf16>, vector<32x64xbf16>, vector<16x64xf32> -> vector<16x64xf32>
    %c0_5 = arith.constant 0 : index
    %c0_6 = arith.constant 0 : index
    %7 = vector.load %arg5[%c0_5, %c0_6] : memref<1x64xf32, #tpu.memory_space<vmem>>, vector<1x64xf32>
    %8 = vector.broadcast %7 : vector<1x64xf32> to vector<16x64xf32>
    %9 = arith.addf %6, %8 : vector<16x64xf32>
    %10 = vector.extract_strided_slice %9 {offsets = [0, 0], sizes = [16, 32], strides = [1, 1]} : vector<16x64xf32> to vector<16x32xf32>
    %11 = arith.truncf %10 : vector<16x32xf32> to vector<16x32xbf16>
    %12 = vector.extract_strided_slice %9 {offsets = [0, 32], sizes = [16, 32], strides = [1, 1]} : vector<16x64xf32> to vector<16x32xf32>
    %13 = arith.truncf %12 : vector<16x32xf32> to vector<16x32xbf16>
    %c0_7 = arith.constant 0 : index
    %c0_8 = arith.constant 0 : index
    %14 = vector.load %arg3[%c0_7, %c0_8] : memref<8x32xbf16, #tpu.memory_space<vmem>>, vector<8x32xbf16>
    %cst_9 = arith.constant dense<0.000000e+00> : vector<8x16xf32>
    %15 = tpu.matmul %14, %11, %cst_9 {dimension_numbers = #tpu.dot_dimension_numbers<[1], [1], [0], [0], [0, 0, 1, 0], [], []>} : vector<8x32xbf16>, vector<16x32xbf16>, vector<8x16xf32> -> vector<8x16xf32>
    %c0_10 = arith.constant 0 : index
    %c0_11 = arith.constant 0 : index
    %16 = vector.load %arg10[%c0_10, %c0_11] : memref<8x1xf32, #tpu.memory_space<vmem>>, vector<8x1xf32>
    %cst_12 = arith.constant dense<0xFF800000> : vector<8xf32>
    %17 = vector.multi_reduction <maximumf>, %15, %cst_12 [1] : vector<8x16xf32> to vector<8xf32>
    %18 = vector.shape_cast %17 : vector<8xf32> to vector<8x1xf32>
    %19 = arith.maximumf %16, %18 : vector<8x1xf32>
    %c0_13 = arith.constant 0 : index
    %c0_14 = arith.constant 0 : index
    %20 = vector.load %arg10[%c0_13, %c0_14] : memref<8x1xf32, #tpu.memory_space<vmem>>, vector<8x1xf32>
    %21 = arith.subf %20, %19 : vector<8x1xf32>
    %22 = math.exp %21 : vector<8x1xf32>
    %23 = vector.broadcast %19 : vector<8x1xf32> to vector<8x16xf32>
    %24 = arith.subf %15, %23 : vector<8x16xf32>
    %25 = math.exp %24 : vector<8x16xf32>
    %c0_15 = arith.constant 0 : index
    %c0_16 = arith.constant 0 : index
    %26 = vector.load %arg11[%c0_15, %c0_16] : memref<8x1xf32, #tpu.memory_space<vmem>>, vector<8x1xf32>
    %27 = arith.mulf %22, %26 : vector<8x1xf32>
    %cst_17 = arith.constant dense<0.000000e+00> : vector<8xf32>
    %28 = vector.multi_reduction <add>, %25, %cst_17 [1] : vector<8x16xf32> to vector<8xf32>
    %29 = vector.shape_cast %28 : vector<8xf32> to vector<8x1xf32>
    %30 = arith.addf %27, %29 : vector<8x1xf32>
    %c0_18 = arith.constant 0 : index
    %c0_19 = arith.constant 0 : index
    %31 = vector.load %arg11[%c0_18, %c0_19] : memref<8x1xf32, #tpu.memory_space<vmem>>, vector<8x1xf32>
    tpu.vector_store %arg11[%c0_18, %c0_19], %30 {strides = array<i32>} : memref<8x1xf32, #tpu.memory_space<vmem>>, vector<8x1xf32>,
    %c0_20 = arith.constant 0 : index
    %c0_21 = arith.constant 0 : index
    %32 = vector.load %arg12[%c0_20, %c0_21] : memref<8x32xf32, #tpu.memory_space<vmem>>, vector<8x32xf32>
    %33 = vector.broadcast %22 : vector<8x1xf32> to vector<8x32xf32>
    %34 = arith.mulf %33, %32 : vector<8x32xf32>
    %35 = arith.truncf %25 : vector<8x16xf32> to vector<8x16xbf16>
    %cst_22 = arith.constant dense<0.000000e+00> : vector<8x32xf32>
    %36 = tpu.matmul %35, %13, %cst_22 {dimension_numbers = #tpu.dot_dimension_numbers<[1], [0], [0], [1], [0, 0, 1, 1], [], []>} : vector<8x16xbf16>, vector<16x32xbf16>, vector<8x32xf32> -> vector<8x32xf32>
    %37 = arith.addf %34, %36 : vector<8x32xf32>
    %c0_23 = arith.constant 0 : index
    %c0_24 = arith.constant 0 : index
    %38 = vector.load %arg12[%c0_23, %c0_24] : memref<8x32xf32, #tpu.memory_space<vmem>>, vector<8x32xf32>
    tpu.vector_store %arg12[%c0_23, %c0_24], %37 {strides = array<i32>} : memref<8x32xf32, #tpu.memory_space<vmem>>, vector<8x32xf32>,
    %c0_25 = arith.constant 0 : index
    %c0_26 = arith.constant 0 : index
    %39 = vector.load %arg10[%c0_25, %c0_26] : memref<8x1xf32, #tpu.memory_space<vmem>>, vector<8x1xf32>
    tpu.vector_store %arg10[%c0_25, %c0_26], %19 {strides = array<i32>} : memref<8x1xf32, #tpu.memory_space<vmem>>, vector<8x1xf32>,
    %c1_i32 = arith.constant 1 : i32
    %40 = arith.cmpi eq, %arg1, %c1_i32 : i32
    %41 = arith.extui %40 : i1 to i32
    %c0_i32_27 = arith.constant 0 : i32
    %42 = arith.cmpi ne, %41, %c0_i32_27 : i32
    scf.if %42 {
      %c0_28 = arith.constant 0 : index
      %c0_29 = arith.constant 0 : index
      %43 = vector.load %arg12[%c0_28, %c0_29] : memref<8x32xf32, #tpu.memory_space<vmem>>, vector<8x32xf32>
      %c0_30 = arith.constant 0 : index
      %c0_31 = arith.constant 0 : index
      %44 = vector.load %arg11[%c0_30, %c0_31] : memref<8x1xf32, #tpu.memory_space<vmem>>, vector<8x1xf32>
      %45 = vector.broadcast %44 : vector<8x1xf32> to vector<8x32xf32>
      %46 = arith.divf %43, %45 : vector<8x32xf32>
      %47 = arith.truncf %46 : vector<8x32xf32> to vector<8x32xbf16>
      %c0_32 = arith.constant 0 : index
      %c0_33 = arith.constant 0 : index
      %48 = vector.load %arg6[%c0_32, %c0_33] : memref<32x64xbf16, #tpu.memory_space<vmem>>, vector<32x64xbf16>
      %cst_34 = arith.constant dense<0.000000e+00> : vector<8x64xf32>
      %49 = tpu.matmul %47, %48, %cst_34 {dimension_numbers = #tpu.dot_dimension_numbers<[1], [0], [0], [1], [0, 0, 1, 1], [], []>} : vector<8x32xbf16>, vector<32x64xbf16>, vector<8x64xf32> -> vector<8x64xf32>
      %c0_35 = arith.constant 0 : index
      %c0_36 = arith.constant 0 : index
      %50 = vector.load %arg7[%c0_35, %c0_36] : memref<1x64xf32, #tpu.memory_space<vmem>>, vector<1x64xf32>
      %51 = vector.broadcast %50 : vector<1x64xf32> to vector<8x64xf32>
      %52 = arith.addf %49, %51 : vector<8x64xf32>
      %53 = vector.extract_strided_slice %52 {offsets = [0, 0], sizes = [8, 32], strides = [1, 1]} : vector<8x64xf32> to vector<8x32xf32>
      %54 = arith.truncf %53 : vector<8x32xf32> to vector<8x32xbf16>
      %c0_37 = arith.constant 0 : index
      %c0_38 = arith.constant 0 : index
      %c0_39 = arith.constant 0 : index
      %55 = vector.load %arg8[%c0_37, %c0_38, %c0_39] : memref<1x8x32xbf16, #tpu.memory_space<vmem>>, vector<1x8x32xbf16>
      %56 = vector.shape_cast %55 : vector<1x8x32xbf16> to vector<8x32xbf16>
      %57 = vector.shape_cast %54 : vector<8x32xbf16> to vector<1x8x32xbf16>
      tpu.vector_store %arg8[%c0_37, %c0_38, %c0_39], %57 {strides = array<i32>} : memref<1x8x32xbf16, #tpu.memory_space<vmem>>, vector<1x8x32xbf16>,
      %58 = vector.extract_strided_slice %52 {offsets = [0, 32], sizes = [8, 32], strides = [1, 1]} : vector<8x64xf32> to vector<8x32xf32>
      %59 = arith.truncf %58 : vector<8x32xf32> to vector<8x32xbf16>
      %c0_40 = arith.constant 0 : index
      %c0_41 = arith.constant 0 : index
      %c0_42 = arith.constant 0 : index
      %60 = vector.load %arg9[%c0_40, %c0_41, %c0_42] : memref<1x8x32xbf16, #tpu.memory_space<vmem>>, vector<1x8x32xbf16>
      %61 = vector.shape_cast %60 : vector<1x8x32xbf16> to vector<8x32xbf16>
      %62 = vector.shape_cast %59 : vector<8x32xbf16> to vector<1x8x32xbf16>
      tpu.vector_store %arg9[%c0_40, %c0_41, %c0_42], %62 {strides = array<i32>} : memref<1x8x32xbf16, #tpu.memory_space<vmem>>, vector<1x8x32xbf16>,
    } else {
    }
    return
  }
  func.func @transform_0(%arg0: i32, %arg1: i32) -> (i32, i32, i32) {
    %c0_i32 = arith.constant 0 : i32
    %c0_i32_0 = arith.constant 0 : i32
    return %arg0, %arg1, %c0_i32 : i32, i32, i32
  }
  func.func @transform_1(%arg0: i32, %arg1: i32) -> (i32, i32) {
    %c0_i32 = arith.constant 0 : i32
    %c0_i32_0 = arith.constant 0 : i32
    %c0_i32_1 = arith.constant 0 : i32
    return %c0_i32, %c0_i32_0 : i32, i32
  }
  func.func @transform_2(%arg0: i32, %arg1: i32) -> (i32, i32) {
    %c0_i32 = arith.constant 0 : i32
    %c0_i32_0 = arith.constant 0 : i32
    %c0_i32_1 = arith.constant 0 : i32
    return %c0_i32, %c0_i32_0 : i32, i32
  }
  func.func @transform_3(%arg0: i32, %arg1: i32) -> (i32, i32) {
    %c0_i32 = arith.constant 0 : i32
    %c0_i32_0 = arith.constant 0 : i32
    %c0_i32_1 = arith.constant 0 : i32
    return %c0_i32, %c0_i32_0 : i32, i32
  }
  func.func @transform_4(%arg0: i32, %arg1: i32) -> (i32, i32) {
    %c0_i32 = arith.constant 0 : i32
    %c0_i32_0 = arith.constant 0 : i32
    %c0_i32_1 = arith.constant 0 : i32
    return %c0_i32, %c0_i32_0 : i32, i32
  }
  func.func @transform_5(%arg0: i32, %arg1: i32) -> (i32, i32) {
    %c0_i32 = arith.constant 0 : i32
    %c0_i32_0 = arith.constant 0 : i32
    %c0_i32_1 = arith.constant 0 : i32
    return %c0_i32, %c0_i32_0 : i32, i32
  }
  func.func @transform_6(%arg0: i32, %arg1: i32) -> (i32, i32, i32) {
    %c0_i32 = arith.constant 0 : i32
    %c0_i32_0 = arith.constant 0 : i32
    %c0_i32_1 = arith.constant 0 : i32
    return %arg0, %c0_i32, %c0_i32_0 : i32, i32, i32
  }
  func.func @transform_7(%arg0: i32, %arg1: i32) -> (i32, i32, i32) {
    %c0_i32 = arith.constant 0 : i32
    %c0_i32_0 = arith.constant 0 : i32
    %c0_i32_1 = arith.constant 0 : i32
    return %arg0, %c0_i32, %c0_i32_0 : i32, i32, i32
  }
}

</mosaic_0001>

<llo_original>
// kernel: tpu_custom_call.1
$region0: #{tpu_custom_call.1}
  #allocation0 [shape = 'u32[]', space=smem, size = 0x4, offset = 0x4, fixed_abs, tag = 'smem constant byte address 0x4 - core index']
  #allocation1 [shape = 'u32[72,128]{1,0:T(1,128)}', space=vmem, size = 0x9000, scoped, tag = 'internal scratch']
  #allocation2 [shape = 'f32[8,1]{1,0:T(8,128)}', space=vmem, size = 0x1000, scoped, tag = 'scratch operand']
  #allocation3 [shape = 'f32[8,1]{1,0:T(8,128)}', space=vmem, size = 0x1000, scoped, tag = 'scratch operand']
  #allocation4 [shape = 'f32[8,32]{1,0:T(8,128)}', space=vmem, size = 0x1000, scoped, tag = 'scratch operand']
  %s0 = inlined_call_operand.hbm [shape: bf16[2,32,32], index: 0, kind: input, shape index: {}]
  %s1 = inlined_call_operand.hbm [shape: bf16[8,32], index: 1, kind: input, shape index: {}]
  %s2 = inlined_call_operand.hbm [shape: bf16[32,64], index: 2, kind: input, shape index: {}]
  %s3 = inlined_call_operand.vmem [shape: f32[1,64], index: 3, kind: input, shape index: {}]
  %s4 = inlined_call_operand.hbm [shape: bf16[32,64], index: 4, kind: input, shape index: {}]
  %s5 = inlined_call_operand.vmem [shape: f32[1,64], index: 5, kind: input, shape index: {}]
  %s6 = inlined_call_operand.hbm [shape: bf16[2,8,32], index: 6, kind: output, shape index: {0}]
  %s7 = inlined_call_operand.hbm [shape: bf16[2,8,32], index: 7, kind: output, shape index: {1}]
  %8 = xla_tuple %s6, %s7
  %s9 = sld [smem:[#allocation0]]
  $region89: #{tpu_custom_call.1} parent=0
    _
  %s11 = ssub.s32 1, %s9
  %s12 = scalar_select 0, %s11, %s9
  $region1: #{tpu_custom_call.1} parent=0
    #allocation5 [shape = 'u8[8192]{0}', space=vmem, size = 0x2000, scoped, tag = 'input window, operand 0']
    #allocation6 [shape = 's32[2]{0}', space=sflag, size = 0x8, scoped, tag = 'scoped memory for tpu_custom_call.1']
    #allocation7 [shape = 's32[2]{0}', space=sflag, size = 0x8, scoped, tag = 'scoped memory for tpu_custom_call.1']
    #allocation8 [shape = 'u8[2048]{0}', space=vmem, size = 0x800, scoped, tag = 'input window, operand 1, single buffered']
    #allocation9 [shape = 's32[1]{0}', space=sflag, size = 0x4, scoped, tag = 'scoped memory for tpu_custom_call.1']
    #allocation10 [shape = 'u8[8192]{0}', space=vmem, size = 0x2000, scoped, tag = 'input window, operand 2, single buffered']
    #allocation11 [shape = 'u8[8192]{0}', space=vmem, size = 0x2000, scoped, tag = 'input window, operand 4, single buffered']
    #allocation12 [shape = 's32[1]{0}', space=sflag, size = 0x4, scoped, tag = 'scoped memory for tpu_custom_call.1']
    #allocation13 [shape = 'u8[4096]{0}', space=vmem, size = 0x1000, scoped, tag = 'output window, operand 0']
    #allocation14 [shape = 'u8[4096]{0}', space=vmem, size = 0x1000, scoped, tag = 'output window, operand 1']
    #allocation15 [shape = 's32[2]{0}', space=sflag, size = 0x8, scoped, tag = 'scoped memory for tpu_custom_call.1']
    %13 = vsyncpa [#allocation6], 0
    %s14 = scalar_lea.sflag [#allocation6], 1
    %15 = vsyncpa %s14, 0
    %16 = vsyncpa [#allocation9], 0
    %17 = vsyncpa [#allocation12], 0
    %18 = vsyncpa [#allocation7], 0
    %s19 = scalar_lea.sflag [#allocation7], 1
    %20 = vsyncpa %s19, 0
    %21 = vsyncpa [#allocation15], 0
    %s22 = scalar_lea.sflag [#allocation15], 1
    %23 = vsyncpa %s22, 0
    loop: start=0, step=1, limit=6
    $region2: #{tpu_custom_call.1} parent=1 // loop_pre_header
      _
    $region3: #{tpu_custom_call.1} parent=1 // loop_header
      %s25 = sphi 0, %s29
      %p26 = scmp.ge.s32.totalorder %s25, 6
      %s32 = sphi 0, %s44
      %s33 = sphi 0, %s40
      %s34 = sphi 0, %s32
      %s35 = sphi 0, %s33
      %s36 = sphi 0, %s34
      %s37 = sphi 0, %s35
      %s49 = sphi 0, %s51
      %s52 = sphi 0, %s49
      %s53 = sphi 0, %s52
      %s69 = sphi 0, %s53
      %s73 = sphi 0, %s73
      %s75 = sphi 0, %s73
      %s76 = sphi 0, %s75
      %s90 = sphi 0, %s76
      %s94 = sphi 0, %s94
      %s96 = sphi 0, %s94
      %s97 = sphi 0, %s96
      %s111 = sphi 0, %s97
      %s115 = sphi 0, %s115
      %s117 = sphi 0, %s115
      %s118 = sphi 0, %s117
      %s132 = sphi 0, %s118
      %s136 = sphi 0, %s136
      %s138 = sphi 0, %s136
      %s139 = sphi 0, %s138
      %s153 = sphi 0, %s139
      %s157 = sphi 0, %s157
      %s159 = sphi 0, %s157
      %s160 = sphi 0, %s159
      %s174 = sphi 0, %s160
      %s180 = sphi 0, %s182
      %s183 = sphi 0, %s180
      %s184 = sphi 0, %s183
      %s200 = sphi 0, %s184
      %s206 = sphi 0, %s208
      %s209 = sphi 0, %s206
      %s210 = sphi 0, %s209
      %s226 = sphi 0, %s210
    $region4: #{tpu_custom_call.1} parent=1 // loop_header_branch
      %28 = sbr.rel (%p26) target = $region8
    $region5: #{tpu_custom_call.1} parent=1 // loop_body
      %s30 = ssub.s32 %s25, 1
      %s31 = ssub.s32 %s25, 2
      %s38 = sadd.s32 1, %s33
      %p39 = scmp.ge.s32.totalorder %s38, 2
      %s40 = scalar_select %p39, 0, %s38
      %s41 = sadd.s32 1, %s32
      %s42 = scalar_select %p39, %s41, %s32
      %p43 = scmp.ge.s32.totalorder %s42, 2
      %s44 = scalar_select %p43, 0, %s42
      %s45 = ssub.s32 %s32, %s44
      %s46 = ssub.s32 %s33, %s40
      %s47 = sor.u32 %s45, %s46
      %p48 = scmp.eq.s32.totalorder %s47, 0
      %s50 = sadd.s32 %s49, 1
      %s51 = scalar_select %p48, %s49, %s50
      %p54 = pneg %p48
      %p55 = scmp.eq.s32.totalorder %s25, 3
      %p56 = por %p54, %p55
      %p57 = scmp.ne.s32.totalorder %s49, %s52
      %p58 = scmp.eq.s32.totalorder %s25, 0
      %p59 = por %p57, %p58
      %p60 = scmp.ne.s32.totalorder %s49, %s52
      %p61 = scmp.eq.s32.totalorder %s30, 3
      %p62 = por %p60, %p61
      %p63 = scmp.ne.s32.totalorder %s52, %s53
      %p64 = scmp.eq.s32.totalorder %s30, 0
      %p65 = por %p63, %p64
      %p66 = scmp.ne.s32.totalorder %s52, %s53
      %p67 = scmp.eq.s32.totalorder %s31, 3
      %p68 = por %p66, %p67
      %p70 = scmp.ne.s32.totalorder %s53, %s69
      %p71 = scmp.eq.s32.totalorder %s31, 0
      %p72 = por %p70, %p71
      %s74 = sadd.s32 %s73, 1
      %p77 = scmp.eq.s32.totalorder %s25, 3
      %p78 = scmp.ne.s32.totalorder %s73, %s75
      %p79 = scmp.eq.s32.totalorder %s25, 0
      %p80 = por %p78, %p79
      %p81 = scmp.ne.s32.totalorder %s73, %s75
      %p82 = scmp.eq.s32.totalorder %s30, 3
      %p83 = por %p81, %p82
      %p84 = scmp.ne.s32.totalorder %s75, %s76
      %p85 = scmp.eq.s32.totalorder %s30, 0
      %p86 = por %p84, %p85
      %p87 = scmp.ne.s32.totalorder %s75, %s76
      %p88 = scmp.eq.s32.totalorder %s31, 3
      %p89 = por %p87, %p88
      %p91 = scmp.ne.s32.totalorder %s76, %s90
      %p92 = scmp.eq.s32.totalorder %s31, 0
      %p93 = por %p91, %p92
      %s95 = sadd.s32 %s94, 1
      %p98 = scmp.eq.s32.totalorder %s25, 3
      %p99 = scmp.ne.s32.totalorder %s94, %s96
      %p100 = scmp.eq.s32.totalorder %s25, 0
      %p101 = por %p99, %p100
      %p102 = scmp.ne.s32.totalorder %s94, %s96
      %p103 = scmp.eq.s32.totalorder %s30, 3
      %p104 = por %p102, %p103
      %p105 = scmp.ne.s32.totalorder %s96, %s97
      %p106 = scmp.eq.s32.totalorder %s30, 0
      %p107 = por %p105, %p106
      %p108 = scmp.ne.s32.totalorder %s96, %s97
      %p109 = scmp.eq.s32.totalorder %s31, 3
      %p110 = por %p108, %p109
      %p112 = scmp.ne.s32.totalorder %s97, %s111
      %p113 = scmp.eq.s32.totalorder %s31, 0
      %p114 = por %p112, %p113
      %s116 = sadd.s32 %s115, 1
      %p119 = scmp.eq.s32.totalorder %s25, 3
      %p120 = scmp.ne.s32.totalorder %s115, %s117
      %p121 = scmp.eq.s32.totalorder %s25, 0
      %p122 = por %p120, %p121
      %p123 = scmp.ne.s32.totalorder %s115, %s117
      %p124 = scmp.eq.s32.totalorder %s30, 3
      %p125 = por %p123, %p124
      %p126 = scmp.ne.s32.totalorder %s117, %s118
      %p127 = scmp.eq.s32.totalorder %s30, 0
      %p128 = por %p126, %p127
      %p129 = scmp.ne.s32.totalorder %s117, %s118
      %p130 = scmp.eq.s32.totalorder %s31, 3
      %p131 = por %p129, %p130
      %p133 = scmp.ne.s32.totalorder %s118, %s132
      %p134 = scmp.eq.s32.totalorder %s31, 0
      %p135 = por %p133, %p134
      %s137 = sadd.s32 %s136, 1
      %p140 = scmp.eq.s32.totalorder %s25, 3
      %p141 = scmp.ne.s32.totalorder %s136, %s138
      %p142 = scmp.eq.s32.totalorder %s25, 0
      %p143 = por %p141, %p142
      %p144 = scmp.ne.s32.totalorder %s136, %s138
      %p145 = scmp.eq.s32.totalorder %s30, 3
      %p146 = por %p144, %p145
      %p147 = scmp.ne.s32.totalorder %s138, %s139
      %p148 = scmp.eq.s32.totalorder %s30, 0
      %p149 = por %p147, %p148
      %p150 = scmp.ne.s32.totalorder %s138, %s139
      %p151 = scmp.eq.s32.totalorder %s31, 3
      %p152 = por %p150, %p151
      %p154 = scmp.ne.s32.totalorder %s139, %s153
      %p155 = scmp.eq.s32.totalorder %s31, 0
      %p156 = por %p154, %p155
      %s158 = sadd.s32 %s157, 1
      %p161 = scmp.eq.s32.totalorder %s25, 3
      %p162 = scmp.ne.s32.totalorder %s157, %s159
      %p163 = scmp.eq.s32.totalorder %s25, 0
      %p164 = por %p162, %p163
      %p165 = scmp.ne.s32.totalorder %s157, %s159
      %p166 = scmp.eq.s32.totalorder %s30, 3
      %p167 = por %p165, %p166
      %p168 = scmp.ne.s32.totalorder %s159, %s160
      %p169 = scmp.eq.s32.totalorder %s30, 0
      %p170 = por %p168, %p169
      %p171 = scmp.ne.s32.totalorder %s159, %s160
      %p172 = scmp.eq.s32.totalorder %s31, 3
      %p173 = por %p171, %p172
      %p175 = scmp.ne.s32.totalorder %s160, %s174
      %p176 = scmp.eq.s32.totalorder %s31, 0
      %p177 = por %p175, %p176
      %s178 = ssub.s32 %s32, %s44
      %p179 = scmp.eq.s32.totalorder %s178, 0
      %s181 = sadd.s32 %s180, 1
      %s182 = scalar_select %p179, %s180, %s181
      %p185 = pneg %p179
      %p186 = scmp.eq.s32.totalorder %s25, 3
      %p187 = por %p185, %p186
      %p188 = scmp.ne.s32.totalorder %s180, %s183
      %p189 = scmp.eq.s32.totalorder %s25, 0
      %p190 = por %p188, %p189
      %p191 = scmp.ne.s32.totalorder %s180, %s183
      %p192 = scmp.eq.s32.totalorder %s30, 3
      %p193 = por %p191, %p192
      %p194 = scmp.ne.s32.totalorder %s183, %s184
      %p195 = scmp.eq.s32.totalorder %s30, 0
      %p196 = por %p194, %p195
      %p197 = scmp.ne.s32.totalorder %s183, %s184
      %p198 = scmp.eq.s32.totalorder %s31, 3
      %p199 = por %p197, %p198
      %p201 = scmp.ne.s32.totalorder %s184, %s200
      %p202 = scmp.eq.s32.totalorder %s31, 0
      %p203 = por %p201, %p202
      %s204 = ssub.s32 %s32, %s44
      %p205 = scmp.eq.s32.totalorder %s204, 0
      %s207 = sadd.s32 %s206, 1
      %s208 = scalar_select %p205, %s206, %s207
      %p211 = pneg %p205
      %p212 = scmp.eq.s32.totalorder %s25, 3
      %p213 = por %p211, %p212
      %p214 = scmp.ne.s32.totalorder %s206, %s209
      %p215 = scmp.eq.s32.totalorder %s25, 0
      %p216 = por %p214, %p215
      %p217 = scmp.ne.s32.totalorder %s206, %s209
      %p218 = scmp.eq.s32.totalorder %s30, 3
      %p219 = por %p217, %p218
      %p220 = scmp.ne.s32.totalorder %s209, %s210
      %p221 = scmp.eq.s32.totalorder %s30, 0
      %p222 = por %p220, %p221
      %p223 = scmp.ne.s32.totalorder %s209, %s210
      %p224 = scmp.eq.s32.totalorder %s31, 3
      %p225 = por %p223, %p224
      %p227 = scmp.ne.s32.totalorder %s210, %s226
      %p228 = scmp.eq.s32.totalorder %s31, 0
      %p229 = por %p227, %p228
      %p230 = scmp.le.s32.totalorder 1, %s25
      %p231 = scmp.lt.s32.totalorder %s25, 5
      %p232 = pnand %p230, %p231
      %p233 = pneg %p232
      // Predicated region
      $region9: #{tpu_custom_call.1} parent=5 // pred_check
        _
      $region10: #{tpu_custom_call.1} parent=5 // pred_check_branch
        %235 = sbr.rel (%p232) target = $region12
      $region11: #{tpu_custom_call.1} parent=5 // pred_region
        %s236 = ssub.s32 %s25, 1
        // Predicated region
        $region13: #{tpu_custom_call.1} parent=11 // pred_check
          %p237 = pneg %p86
        $region14: #{tpu_custom_call.1} parent=11 // pred_check_branch
          %239 = sbr.rel (%p237) target = $region16
        $region15: #{tpu_custom_call.1} parent=11 // pred_region
          %241 = vsyncadd [#allocation9], 0
          %s243 = sshll.u32 %s1, 4
          %s244 = int_to_ptr.hbm [resolvable:$true] %s243
          %s245 = sshll.u32 [#allocation8], 4
          %s246 = int_to_ptr.vmem [resolvable:$true] %s245
          %248 = dma.hbm_to_vmem [thread:$0]  %s244, 64, %s246, [#allocation9]
        $region16: #{tpu_custom_call.1} parent=11 // pred_fallthru
          _
        // Predicated region
        $region17: #{tpu_custom_call.1} parent=11 // pred_check
          %p249 = pneg %p107
        $region18: #{tpu_custom_call.1} parent=11 // pred_check_branch
          %251 = sbr.rel (%p249) target = $region20
        $region19: #{tpu_custom_call.1} parent=11 // pred_region
          %253 = vsyncadd [#allocation9], 0
          %s254 = sshll.u32 %s2, 4
          %s255 = int_to_ptr.hbm [resolvable:$true] %s254
          %s256 = sshll.u32 [#allocation10], 4
          %s257 = int_to_ptr.vmem [resolvable:$true] %s256
          %262 = dma.hbm_to_vmem [thread:$0]  %s255, 256, %s257, [#allocation9], 64, 64, 4
        $region20: #{tpu_custom_call.1} parent=11 // pred_fallthru
          _
        // Predicated region
        $region21: #{tpu_custom_call.1} parent=11 // pred_check
          %p263 = pneg %p128
        $region22: #{tpu_custom_call.1} parent=11 // pred_check_branch
          %265 = sbr.rel (%p263) target = $region24
        $region23: #{tpu_custom_call.1} parent=11 // pred_region
          _
        $region24: #{tpu_custom_call.1} parent=11 // pred_fallthru
          _
        // Predicated region
        $region25: #{tpu_custom_call.1} parent=11 // pred_check
          %p266 = pneg %p149
        $region26: #{tpu_custom_call.1} parent=11 // pred_check_branch
          %268 = sbr.rel (%p266) target = $region28
        $region27: #{tpu_custom_call.1} parent=11 // pred_region
          %270 = vsyncadd [#allocation12], 0
          %s271 = sshll.u32 %s4, 4
          %s272 = int_to_ptr.hbm [resolvable:$true] %s271
          %s273 = sshll.u32 [#allocation11], 4
          %s274 = int_to_ptr.vmem [resolvable:$true] %s273
          %279 = dma.hbm_to_vmem [thread:$0]  %s272, 256, %s274, [#allocation12], 64, 64, 4
        $region28: #{tpu_custom_call.1} parent=11 // pred_fallthru
          _
        // Predicated region
        $region29: #{tpu_custom_call.1} parent=11 // pred_check
          %p280 = pneg %p170
        $region30: #{tpu_custom_call.1} parent=11 // pred_check_branch
          %282 = sbr.rel (%p280) target = $region32
        $region31: #{tpu_custom_call.1} parent=11 // pred_region
          _
        $region32: #{tpu_custom_call.1} parent=11 // pred_fallthru
          _
      $region12: #{tpu_custom_call.1} parent=5 // pred_fallthru
        _
      %p283 = scmp.lt.s32.totalorder %s25, 4
      // Predicated region
      $region33: #{tpu_custom_call.1} parent=5 // pred_check
        %p284 = pneg %p283
      $region34: #{tpu_custom_call.1} parent=5 // pred_check_branch
        %286 = sbr.rel (%p284) target = $region36
      $region35: #{tpu_custom_call.1} parent=5 // pred_region
        // Predicated region
        $region37: #{tpu_custom_call.1} parent=35 // pred_check
          %p287 = pneg %p59
        $region38: #{tpu_custom_call.1} parent=35 // pred_check_branch
          %289 = sbr.rel (%p287) target = $region40
        $region39: #{tpu_custom_call.1} parent=35 // pred_region
          %s290 = sand.u32 %s49, 1
          %s291 = scalar_lea.sflag [#allocation6], %s290
          %s292 = sand.u32 %s49, 1
          %s293 = smul.addr %s292, 8
          %s294 = scalar_lea.vmem [#allocation5], %s293
          %s295 = smul.u32 2, %s33
          %297 = vsyncadd %s291, 0
          %s298 = smul.addr %s32, 4
          %s299 = sadd.s32 %s295, %s298
          %s300 = smul.addr %s299, 4
          %s301 = scalar_lea.hbm %s0, %s300
          %s302 = sshll.u32 %s301, 4
          %s303 = int_to_ptr.hbm [resolvable:$true] %s302
          %s304 = sshll.u32 %s294, 4
          %s305 = int_to_ptr.vmem [resolvable:$true] %s304
          %310 = dma.hbm_to_vmem [thread:$0]  %s303, 128, %s305, %s291, 64, 64, 4
        $region40: #{tpu_custom_call.1} parent=35 // pred_fallthru
          _
      $region36: #{tpu_custom_call.1} parent=5 // pred_fallthru
        _
      %p311 = scmp.le.s32.totalorder 1, %s25
      %p312 = scmp.lt.s32.totalorder %s25, 5
      %p313 = pnand %p311, %p312
      %p314 = pneg %p313
      // Predicated region
      $region41: #{tpu_custom_call.1} parent=5 // pred_check
        _
      $region42: #{tpu_custom_call.1} parent=5 // pred_check_branch
        %316 = sbr.rel (%p313) target = $region44
      $region43: #{tpu_custom_call.1} parent=5 // pred_region
        %s317 = ssub.s32 %s25, 1
        %s318 = sand.u32 %s52, 1
        %s319 = scalar_lea.sflag [#allocation6], %s318
        %s320 = sand.u32 %s52, 1
        %s321 = smul.addr %s320, 8
        %s322 = scalar_lea.vmem [#allocation5], %s321
        // Predicated region
        $region45: #{tpu_custom_call.1} parent=43 // pred_check
          %p323 = pneg %p65
        $region46: #{tpu_custom_call.1} parent=43 // pred_check_branch
          %325 = sbr.rel (%p323) target = $region48
        $region47: #{tpu_custom_call.1} parent=43 // pred_region
          %327 = dma.done %s319, 128
        $region48: #{tpu_custom_call.1} parent=43 // pred_fallthru
          _
        // Predicated region
        $region49: #{tpu_custom_call.1} parent=43 // pred_check
          %p328 = pneg %p86
        $region50: #{tpu_custom_call.1} parent=43 // pred_check_branch
          %330 = sbr.rel (%p328) target = $region52
        $region51: #{tpu_custom_call.1} parent=43 // pred_region
          %332 = dma.done [#allocation9], 64
        $region52: #{tpu_custom_call.1} parent=43 // pred_fallthru
          _
        // Predicated region
        $region53: #{tpu_custom_call.1} parent=43 // pred_check
          %p333 = pneg %p107
        $region54: #{tpu_custom_call.1} parent=43 // pred_check_branch
          %335 = sbr.rel (%p333) target = $region56
        $region55: #{tpu_custom_call.1} parent=43 // pred_region
          %337 = dma.done [#allocation9], 256
        $region56: #{tpu_custom_call.1} parent=43 // pred_fallthru
          _
        // Predicated region
        $region57: #{tpu_custom_call.1} parent=43 // pred_check
          %p338 = pneg %p149
        $region58: #{tpu_custom_call.1} parent=43 // pred_check_branch
          %340 = sbr.rel (%p338) target = $region60
        $region59: #{tpu_custom_call.1} parent=43 // pred_region
          %342 = dma.done [#allocation12], 256
        $region60: #{tpu_custom_call.1} parent=43 // pred_fallthru
          _
        %s343 = sand.u32 %s52, 1
        %s344 = scalar_lea.sflag [#allocation6], %s343
        %s345 = sand.u32 %s52, 1
        %s346 = smul.addr %s345, 8
        %s347 = scalar_lea.vmem [#allocation5], %s346
        %p348 = pneg %p65
        %p349 = pneg %p62
        %p350 = pneg %p86
        %p351 = pneg %p83
        %p352 = pneg %p107
        %p353 = pneg %p104
        %p354 = pneg %p128
        %p355 = pneg %p125
        %p356 = pneg %p149
        %p357 = pneg %p146
        %p358 = pneg %p170
        %p359 = pneg %p167
        %p360 = pneg %p196
        %p361 = pneg %p193
        %s362 = sand.u32 %s183, 1
        %s363 = scalar_lea.sflag [#allocation7], %s362
        %s364 = sand.u32 %s183, 1
        %s365 = smul.addr %s364, 4
        %s366 = scalar_lea.vmem [#allocation13], %s365
        %p367 = pneg %p222
        %p368 = pneg %p219
        %s369 = sand.u32 %s209, 1
        %s370 = scalar_lea.sflag [#allocation15], %s369
        %s371 = sand.u32 %s209, 1
        %s372 = smul.addr %s371, 4
        %s373 = scalar_lea.vmem [#allocation14], %s372
        %s374 = smul.u32 2, %s35
        %p376 = scmp.eq.s32.totalorder %s35, 0
        // Predicated region
        $region61: #{tpu_custom_call.1} parent=43 // pred_check
          %p377 = pneg %p376
        $region62: #{tpu_custom_call.1} parent=43 // pred_check_branch
          %379 = sbr.rel (%p377) target = $region64
        $region63: #{tpu_custom_call.1} parent=43 // pred_region
          %vm380 = vcmask 7168
          %381 = vst.msk [vmem:[#allocation2] sm:$0xff] %vm380, -inf
          %382 = vst.msk [vmem:[#allocation3] sm:$0xff] %vm380, 0.0
          %vm383 = vcmask 261120
          %384 = vst.msk [vmem:[#allocation4] sm:$0xff] %vm383, 0.0
        $region64: #{tpu_custom_call.1} parent=43 // pred_fallthru
          _
        %v385 = vld [vmem:[%s322] sm:$0xf]
        %v386 = vld [vmem:[%s322 + $0x4] sm:$0xf]
        %v387 = vld [vmem:[#allocation10] sm:$0xf]
        %v388 = vld [vmem:[#allocation10 + $0x4] sm:$0xf]
        %v389 = vld [vmem:[#allocation10 + $0x8] sm:$0xf]
        %v390 = vld [vmem:[#allocation10 + $0xc] sm:$0xf]
        %v391 = vld [vmem:[%s3] sm:$0x1]
        %v393 = vperm.slane %v391, 0
        %v397 = vunpack.c.l.b16 %v385
        %v398 = vunpack.c.l.b16 %v386
        %v399 = vpack.c.b16 %v398, %v397
        %v404 = vunpack.c.l.b16 %v387
        %v405 = vunpack.c.l.b16 %v388
        %v406 = vunpack.c.l.b16 %v389
        %v407 = vunpack.c.l.b16 %v390
        %v408 = vpack.c.b16 %v405, %v404
        %v409 = vpack.c.b16 %v407, %v406
        %vm412 = vcmask 261120
        %v414 = vsel %vm412, %v399, 0
        %416 = vmatpush.bf16.msra.mxu0 0
        %417 = vmatpush.bf16.msra.mxu0 0
        %418 = vmatpush.bf16.msra.mxu0 0
        %419 = vmatpush.bf16.msra.mxu0 0
        %420 = vmatpush.bf16.msra.mxu0 0
        %421 = vmatpush.bf16.msra.mxu0 0
        %422 = vmatpush.bf16.msra.mxu0 %v409
        %423 = vmatpush.bf16.msra.mxu0 %v408
        %424 = vmatmul.bf16.gmra.mxu0 %v414
        %v425 = vpop.f32.mrf.mxu0
        %v426 = vadd.f32 %v393, %v425
        %v427 = vpop.f32.mrf.mxu0
        %v428 = vadd.f32 %v393, %v427
        %429 = vdwg.mxu0
        %v430 = vpack.c.bf16 %v428, %v426
        %v431 = vld [vmem:[#allocation8] sm:$0xf]
        %v433 = vsel %vm412, %v431, 0
        %v436 = vsel %vm412, %v430, 0
        %438 = vmatpush.bf16.xpose.msra.mxu0 0
        %439 = vmatpush.bf16.xpose.msra.mxu0 0
        %440 = vmatpush.bf16.xpose.msra.mxu0 0
        %441 = vmatpush.bf16.xpose.msra.mxu0 0
        %442 = vmatpush.bf16.xpose.msra.mxu0 0
        %443 = vmatpush.bf16.xpose.msra.mxu0 0
        %444 = vmatpush.bf16.xpose.msra.mxu0 0
        %445 = vmatpush.bf16.xpose.msra.mxu0 %v436
        %446 = vmatmul.bf16.gmra.mxu0 %v433
        %v447 = vpop.f32.mrf.mxu0
        %v448 = vadd.f32 0.0, %v447
        %v449 = vpop.f32.mrf.mxu0
        %450 = vdwg.mxu0
        %v451 = vld [vmem:[#allocation2] sm:$0xff]
        %vm452 = vcmask 130048
        %v453 = vsel %vm452, %v448, -inf
        %454 = vmax.xlane.f32.xlu0 %v453
        %v455 = vpop.xlane.xlu0 %454
        %v456 = vmax.f32 %v451, %v455
        %v457 = vsub.f32 %v451, %v456
        %v458 = vmul.f32 %v457, 1.442695
        %v459 = vpow.pop %v458
        %461 = vset.pattern.permute.xlu0 0
        %462 = vperm.xlu0 %461, %v456
        %v463 = vpop.permute.xlu0 %462
        %v465 = vsub.f32 %v448, %v463
        %v466 = vmul.f32 %v465, 1.442695
        %v467 = vpow.pop %v466
        %v468 = vld [vmem:[#allocation3] sm:$0xff]
        %v469 = vmul.f32 %v459, %v468
        %v470 = vsel %vm452, %v467, 0.0
        %471 = vadd.xlane.f32.xlu0 %v470
        %v472 = vpop.xlane.xlu0 %471
        %v473 = vadd.f32 %v469, %v472
        %vm474 = vcmask 7168
        %475 = vst.msk [vmem:[#allocation3] sm:$0xff] %vm474, %v473
        %v476 = vld [vmem:[#allocation4] sm:$0xff]
        %478 = vset.pattern.permute.xlu0 0
        %479 = vperm.xlu0 %478, %v459
        %v480 = vpop.permute.xlu0 %479
        %v482 = vmul.f32 %v480, %v476
        %v483 = vpack.c.bf16 %v467, %v467
        %485 = vrot.lane.b32.xlu0 %v430, 96
        %v486 = vpop.permute.xlu0 %485
        %v489 = vsel %vm452, %v483, 0
        %491 = vmatpush.bf16.msra.mxu0 0
        %492 = vmatpush.bf16.msra.mxu0 0
        %493 = vmatpush.bf16.msra.mxu0 0
        %494 = vmatpush.bf16.msra.mxu0 0
        %495 = vmatpush.bf16.msra.mxu0 0
        %496 = vmatpush.bf16.msra.mxu0 0
        %497 = vmatpush.bf16.msra.mxu0 0
        %498 = vmatpush.bf16.msra.mxu0 %v486
        %499 = vmatmul.bf16.gmra.mxu0 %v489
        %v500 = vpop.f32.mrf.mxu0
        %v501 = vadd.f32 0.0, %v500
        %v502 = vpop.f32.mrf.mxu0
        %503 = vdwg.mxu0
        %v504 = vadd.f32 %v482, %v501
        %505 = vst.msk [vmem:[#allocation4] sm:$0xff] %vm412, %v504
        %506 = vst.msk [vmem:[#allocation2] sm:$0xff] %vm474, %v456
        %p507 = scmp.eq.s32.totalorder %s35, 1
        // Predicated region
        $region65: #{tpu_custom_call.1} parent=43 // pred_check
          %p508 = pneg %p507
        $region66: #{tpu_custom_call.1} parent=43 // pred_check_branch
          %510 = sbr.rel (%p508) target = $region68
        $region67: #{tpu_custom_call.1} parent=43 // pred_region
          %v511 = vld [vmem:[#allocation4] sm:$0xff]
          %v512 = vld [vmem:[#allocation3] sm:$0xff]
          %514 = vset.pattern.permute.xlu0 0
          %515 = vperm.xlu0 %514, %v512
          %v516 = vpop.permute.xlu0 %515
          %v518 = vrcp.pop %v516
          %v519 = vmul.f32 %v516, %v518
          %v520 = vsub.f32 1.0, %v519
          %v521 = vmul.f32 %v518, %v520
          %v522 = vadd.f32 %v518, %v521
          %vm523 = vweird.f32 %v516
          %vm524 = vweird.f32 %v518
          %vm525 = vmor %vm523, %vm524
          %v526 = vsel %vm525, %v518, %v522
          %v527 = vand.u32 2147483647, %v516
          %vm528 = vcmp.eq.f32.partialorder %v527, 8.507059e+37
          %v529 = vand.u32 %v516, 2147483648
          %v530 = vor.u32 1.1754944e-38, %v529
          %v531 = vsel %vm528, %v530, %v526
          %v532 = vmul.f32 %v511, %v531
          %v533 = vpack.c.bf16 %v532, %v532
          %v534 = vld [vmem:[#allocation11] sm:$0xf]
          %v535 = vld [vmem:[#allocation11 + $0x4] sm:$0xf]
          %v536 = vld [vmem:[#allocation11 + $0x8] sm:$0xf]
          %v537 = vld [vmem:[#allocation11 + $0xc] sm:$0xf]
          %v538 = vld [vmem:[%s5] sm:$0x1]
          %v540 = vperm.slane %v538, 0
          %v546 = vunpack.c.l.b16 %v534
          %v547 = vunpack.c.l.b16 %v535
          %v548 = vunpack.c.l.b16 %v536
          %v549 = vunpack.c.l.b16 %v537
          %v550 = vpack.c.b16 %v547, %v546
          %v551 = vpack.c.b16 %v549, %v548
          %v555 = vsel %vm412, %v533, 0
          %557 = vmatpush.bf16.msra.mxu0 0
          %558 = vmatpush.bf16.msra.mxu0 0
          %559 = vmatpush.bf16.msra.mxu0 0
          %560 = vmatpush.bf16.msra.mxu0 0
          %561 = vmatpush.bf16.msra.mxu0 0
          %562 = vmatpush.bf16.msra.mxu0 0
          %563 = vmatpush.bf16.msra.mxu0 %v551
          %564 = vmatpush.bf16.msra.mxu0 %v550
          %565 = vmatmul.bf16.gmra.mxu0 %v555
          %v566 = vpop.f32.mrf.mxu0
          %v567 = vadd.f32 %v540, %v566
          %v568 = vpop.f32.mrf.mxu0
          %569 = vdwg.mxu0
          %v570 = vpack.c.bf16 %v567, %v567
          %vm571 = vcmask 257024
          %572 = vst.msk [vmem:[%s366] sm:$0xf] %vm571, %v570
          %574 = vrot.lane.b32.xlu0 %v570, 96
          %v575 = vpop.permute.xlu0 %574
          %577 = vst.msk [vmem:[%s373] sm:$0xf] %vm571, %v575
        $region68: #{tpu_custom_call.1} parent=43 // pred_fallthru
          _
        %s578 = sand.u32 %s183, 1
        %s579 = scalar_lea.sflag [#allocation7], %s578
        %s580 = sand.u32 %s183, 1
        %s581 = smul.addr %s580, 4
        %s582 = scalar_lea.vmem [#allocation13], %s581
        %s583 = sand.u32 %s209, 1
        %s584 = scalar_lea.sflag [#allocation15], %s583
        %s585 = sand.u32 %s209, 1
        %s586 = smul.addr %s585, 4
        %s587 = scalar_lea.vmem [#allocation14], %s586
        // Predicated region
        $region69: #{tpu_custom_call.1} parent=43 // pred_check
          %p588 = pneg %p193
        $region70: #{tpu_custom_call.1} parent=43 // pred_check_branch
          %590 = sbr.rel (%p588) target = $region72
        $region71: #{tpu_custom_call.1} parent=43 // pred_region
          %592 = vsyncadd %s579, 0
          %s593 = smul.addr %s34, 4
          %s594 = scalar_lea.hbm %s6, %s593
          %s596 = sshll.u32 %s582, 4
          %s597 = int_to_ptr.vmem [resolvable:$true] %s596
          %s598 = sshll.u32 %s594, 4
          %s599 = int_to_ptr.hbm [resolvable:$true] %s598
          %601 = dma.vmem_to_hbm [thread:$0]  %s597, 64, %s599, %s579
        $region72: #{tpu_custom_call.1} parent=43 // pred_fallthru
          _
        // Predicated region
        $region73: #{tpu_custom_call.1} parent=43 // pred_check
          %p602 = pneg %p219
        $region74: #{tpu_custom_call.1} parent=43 // pred_check_branch
          %604 = sbr.rel (%p602) target = $region76
        $region75: #{tpu_custom_call.1} parent=43 // pred_region
          %606 = vsyncadd %s584, 0
          %s607 = smul.addr %s34, 4
          %s608 = scalar_lea.hbm %s7, %s607
          %s610 = sshll.u32 %s587, 4
          %s611 = int_to_ptr.vmem [resolvable:$true] %s610
          %s612 = sshll.u32 %s608, 4
          %s613 = int_to_ptr.hbm [resolvable:$true] %s612
          %615 = dma.vmem_to_hbm [thread:$0]  %s611, 64, %s613, %s584
        $region76: #{tpu_custom_call.1} parent=43 // pred_fallthru
          _
      $region44: #{tpu_custom_call.1} parent=5 // pred_fallthru
        _
      %p616 = scmp.le.s32.totalorder 2, %s25
      // Predicated region
      $region77: #{tpu_custom_call.1} parent=5 // pred_check
        %p617 = pneg %p616
      $region78: #{tpu_custom_call.1} parent=5 // pred_check_branch
        %619 = sbr.rel (%p617) target = $region80
      $region79: #{tpu_custom_call.1} parent=5 // pred_region
        %s620 = ssub.s32 %s25, 2
        // Predicated region
        $region81: #{tpu_custom_call.1} parent=79 // pred_check
          %p621 = pneg %p199
        $region82: #{tpu_custom_call.1} parent=79 // pred_check_branch
          %623 = sbr.rel (%p621) target = $region84
        $region83: #{tpu_custom_call.1} parent=79 // pred_region
          %s624 = sand.u32 %s184, 1
          %s625 = scalar_lea.sflag [#allocation7], %s624
          %s626 = sand.u32 %s184, 1
          %s627 = smul.addr %s626, 4
          %s628 = scalar_lea.vmem [#allocation13], %s627
          %630 = dma.done %s625, 64
        $region84: #{tpu_custom_call.1} parent=79 // pred_fallthru
          _
        // Predicated region
        $region85: #{tpu_custom_call.1} parent=79 // pred_check
          %p631 = pneg %p225
        $region86: #{tpu_custom_call.1} parent=79 // pred_check_branch
          %633 = sbr.rel (%p631) target = $region88
        $region87: #{tpu_custom_call.1} parent=79 // pred_region
          %s634 = sand.u32 %s210, 1
          %s635 = scalar_lea.sflag [#allocation15], %s634
          %s636 = sand.u32 %s210, 1
          %s637 = smul.addr %s636, 4
          %s638 = scalar_lea.vmem [#allocation14], %s637
          %640 = dma.done %s635, 64
        $region88: #{tpu_custom_call.1} parent=79 // pred_fallthru
          _
      $region80: #{tpu_custom_call.1} parent=5 // pred_fallthru
        _
    $region6: #{tpu_custom_call.1} parent=1 // loop_footer
      %s29 = sadd.s32 1, %s25
    $region7: #{tpu_custom_call.1} parent=1 // loop_footer_branch
      %24 = sbr.rel target = $region3
    $region8: #{tpu_custom_call.1} parent=1 // loop_exit
      _
    %641 = vsyncpa [#allocation6], 1
    %s642 = scalar_lea.sflag [#allocation6], 1
    %643 = vsyncpa %s642, 1
    %644 = vsyncpa [#allocation9], 1
    %645 = vsyncpa [#allocation12], 1
    %646 = vsyncpa [#allocation7], 1
    %s647 = scalar_lea.sflag [#allocation7], 1
    %648 = vsyncpa %s647, 1
    %649 = vsyncpa [#allocation15], 1
    %s650 = scalar_lea.sflag [#allocation15], 1
    %651 = vsyncpa %s650, 1

</llo_original>
